<compile_context>
chip_gen: v6e
topology: v6e:2x2x1
jax: 0.10.0
libtpu: 0.0.40
codegen_flags: <defaults>
</compile_context>

<pallas_src>
import jax
import jax.numpy as jnp
from jax.experimental import pallas as pl
from jax.experimental.pallas import tpu as pltpu


def _round_up(x: int, m: int) -> int:
    return int(pl.cdiv(x, m)) * m


def mlp_kernel(x_ref, w1_ref, w2_ref, b2_ref, o_ref):
    # x_ref : [TILE_B, 8]        (col 6 == 1.0 -> folded b1, col 7 == 0)
    # w1_ref: [8, H_PAD]         (row 6 == b1, row 7 == 0, cols >=200 == 0)
    # w2_ref: [1, H_PAD]         (cols >=200 == 0)
    # b2_ref: SMEM [1, 1]        (scalar bias)
    # o_ref : [TILE_B//128, 128] lane-dense output slab
    tile_b = x_ref.shape[0]
    # hidden = sigmoid(x_aug @ W1_aug)   (bias already folded into the matmul)
    h = jnp.dot(x_ref[...], w1_ref[...], preferred_element_type=jnp.float32)
    h = jax.nn.sigmoid(h)                                   # [TILE_B, H_PAD]
    # output = <hidden, w2_row> + b2   (VPU mul + XLU lane reduce, no MXU)
    prod = h * w2_ref[...]                                  # [TILE_B, H_PAD]
    prod = prod.reshape(tile_b // 128, 128, prod.shape[-1])  # sublane-dim split
    out = jnp.sum(prod, axis=-1) + b2_ref[0, 0]             # [TILE_B//128, 128]
    o_ref[...] = out.astype(o_ref.dtype)


def action_conditioned_ff(x, w1, b1, w2, b2, *, max_tile_b=1024):
    """x: [B, 6] f32; w1: [6, 200]; b1: [200]; w2: [200, 1]; b2: [1].

    Returns [B, 1] f32 = sigmoid(x @ w1 + b1) @ w2 + b2.
    """
    assert max_tile_b % 1024 == 0, "multi-tile output block needs TILE_B % 1024 == 0"
    B, in_size = x.shape
    hidden = w1.shape[1]
    out_size = w2.shape[1]

    K_PAD = 8                                  # 6 real cols + 1 ones col + 1 zero col
    H_PAD = _round_up(hidden, 128)             # 200 -> 256

    # --- batch tiling ------------------------------------------------------
    if B <= max_tile_b:
        tile_b = _round_up(B, 128)             # single tile, grid = (1,)
    else:
        tile_b = max_tile_b                    # multiple of 1024 -> (8,128) out block
    b_pad = _round_up(B, tile_b)
    grid = (b_pad // tile_b,)

    # --- pad / fold parameters in the wrapper ------------------------------
    xp = jnp.zeros((b_pad, K_PAD), jnp.float32)
    xp = xp.at[:B, :in_size].set(x.astype(jnp.float32))
    xp = xp.at[:, in_size].set(1.0)            # ones column -> folds b1

    w1p = jnp.zeros((K_PAD, H_PAD), jnp.float32)
    w1p = w1p.at[:in_size, :hidden].set(w1)
    w1p = w1p.at[in_size, :hidden].set(b1)     # bias row (multiplied by the ones col)

    w2p = jnp.zeros((1, H_PAD), jnp.float32)   # padded cols MUST stay zero
    w2p = w2p.at[0, :hidden].set(w2[:, 0])

    b2p = jnp.asarray(b2, jnp.float32).reshape(1, 1)

    out = pl.pallas_call(
        mlp_kernel,
        out_shape=jax.ShapeDtypeStruct((b_pad // 128, 128), jnp.float32),
        grid=grid,
        in_specs=[
            pl.BlockSpec((tile_b, K_PAD), lambda i: (i, 0)),        # x tile, pipelined
            pl.BlockSpec((K_PAD, H_PAD), lambda i: (0, 0)),         # W1 resident
            pl.BlockSpec((1, H_PAD), lambda i: (0, 0)),             # w2 row resident
            pl.BlockSpec(memory_space=pltpu.MemorySpace.SMEM),      # b2 scalar in SMEM
        ],
        out_specs=pl.BlockSpec((tile_b // 128, 128), lambda i: (i, 0)),
        compiler_params=pltpu.CompilerParams(
            dimension_semantics=("parallel",),   # batch axis: megacore on v7x
        ),
    )(xp, w1p, w2p, b2p)

    # lane-dense slab -> [B, 1]
    return out.reshape(b_pad, 1)[:B]


def init_params(key, input_size=6, hidden_size=200, output_size=1):
    """Deterministic init mimicking PyTorch nn.Linear default U(-1/sqrt(fan_in), +)."""
    k1, k2, k3, k4 = jax.random.split(key, 4)
    bound1 = 1.0 / jnp.sqrt(input_size)
    bound2 = 1.0 / jnp.sqrt(hidden_size)
    w1 = jax.random.uniform(k1, (input_size, hidden_size), jnp.float32, -bound1, bound1)
    b1 = jax.random.uniform(k2, (hidden_size,), jnp.float32, -bound1, bound1)
    w2 = jax.random.uniform(k3, (hidden_size, output_size), jnp.float32, -bound2, bound2)
    b2 = jax.random.uniform(k4, (output_size,), jnp.float32, -bound2, bound2)
    return w1, b1, w2, b2


if __name__ == "__main__":
    key = jax.random.PRNGKey(0)
    k_x, k_x2, k_p = jax.random.split(key, 3)

    input_size, hidden_size, output_size = 6, 200, 1
    w1, b1, w2, b2 = init_params(k_p, input_size, hidden_size, output_size)

    # small batch (single tile, grid=(1,))
    batch = 8
    x = jax.random.normal(k_x, (batch, input_size), jnp.float32)
    out = jax.block_until_ready(action_conditioned_ff(x, w1, b1, w2, b2))
    ref = jax.nn.sigmoid(x @ w1 + b1) @ w2 + b2
    assert out.shape == (batch, output_size)
    assert jnp.allclose(out, ref, atol=1e-5, rtol=1e-5)

    # larger batch: exercises multi-tile grid (2 tiles) + batch-tail padding
    big_batch = 1536
    xb = jax.random.normal(k_x2, (big_batch, input_size), jnp.float32)
    outb = jax.block_until_ready(action_conditioned_ff(xb, w1, b1, w2, b2))
    refb = jax.nn.sigmoid(xb @ w1 + b1) @ w2 + b2
    assert outb.shape == (big_batch, output_size)
    assert jnp.allclose(outb, refb, atol=1e-5, rtol=1e-5)

    print("KERNEL_OK")
</pallas_src>

<mosaic_0001>
module attributes {stable_mosaic.version = 11 : i64} {
  func.func @mlp_kernel(%arg0: i32, %arg1: memref<128x8xf32, #tpu.memory_space<vmem>>, %arg2: memref<8x256xf32, #tpu.memory_space<vmem>>, %arg3: memref<1x256xf32, #tpu.memory_space<vmem>>, %arg4: memref<1x1xf32, #tpu.memory_space<smem>>, %arg5: memref<1x128xf32, #tpu.memory_space<vmem>>) attributes {dimension_semantics = [#tpu.dimension_semantics<parallel>], iteration_bounds = array<i64: 1>, scalar_prefetch = 0 : i64, scratch_operands = 0 : i64, tpu.core_type = #tpu.core_type<tc>, window_params = [{transform_indices = @transform_0, window_bounds = array<i64: 128, 8>}, {pipeline_mode = #tpu.pipeline_mode<synchronous>, transform_indices = @transform_1, window_bounds = array<i64: 8, 256>}, {pipeline_mode = #tpu.pipeline_mode<synchronous>, transform_indices = @transform_2, window_bounds = array<i64: 1, 256>}, {transform_indices = @transform_3, window_bounds = array<i64: 1, 1>}, {transform_indices = @transform_4, window_bounds = array<i64: 1, 128>}]} {
    %c0 = arith.constant 0 : index
    %c0_0 = arith.constant 0 : index
    %0 = vector.load %arg1[%c0, %c0_0] : memref<128x8xf32, #tpu.memory_space<vmem>>, vector<128x8xf32>
    %c0_1 = arith.constant 0 : index
    %c0_2 = arith.constant 0 : index
    %1 = vector.load %arg2[%c0_1, %c0_2] : memref<8x256xf32, #tpu.memory_space<vmem>>, vector<8x256xf32>
    %cst = arith.constant dense<0.000000e+00> : vector<128x256xf32>
    %2 = tpu.matmul %0, %1, %cst {dimension_numbers = #tpu.dot_dimension_numbers<[1], [0], [0], [1], [0, 0, 1, 1], [], []>} : vector<128x8xf32>, vector<8x256xf32>, vector<128x256xf32> -> vector<128x256xf32>
    %3 = arith.negf %2 : vector<128x256xf32>
    %4 = math.exp %3 : vector<128x256xf32>
    %cst_3 = arith.constant 1.000000e+00 : f32
    %5 = vector.broadcast %cst_3 : f32 to vector<128x256xf32>
    %6 = arith.addf %5, %4 : vector<128x256xf32>
    %7 = arith.divf %5, %6 : vector<128x256xf32>
    %c0_4 = arith.constant 0 : index
    %c0_5 = arith.constant 0 : index
    %8 = vector.load %arg3[%c0_4, %c0_5] : memref<1x256xf32, #tpu.memory_space<vmem>>, vector<1x256xf32>
    %9 = vector.broadcast %8 : vector<1x256xf32> to vector<128x256xf32>
    %10 = arith.mulf %7, %9 : vector<128x256xf32>
    %11 = vector.shape_cast %10 : vector<128x256xf32> to vector<1x128x256xf32>
    %cst_6 = arith.constant dense<0.000000e+00> : vector<1x128xf32>
    %12 = vector.multi_reduction <add>, %11, %cst_6 [2] : vector<1x128x256xf32> to vector<1x128xf32>
    %c0_7 = arith.constant 0 : index
    %c0_8 = arith.constant 0 : index
    %13 = memref.load %arg4[%c0_7, %c0_8] : memref<1x1xf32, #tpu.memory_space<smem>>
    %14 = vector.broadcast %13 : f32 to vector<1x128xf32>
    %15 = arith.addf %12, %14 : vector<1x128xf32>
    %c0_9 = arith.constant 0 : index
    %c0_10 = arith.constant 0 : index
    %16 = vector.load %arg5[%c0_9, %c0_10] : memref<1x128xf32, #tpu.memory_space<vmem>>, vector<1x128xf32>
    tpu.vector_store %arg5[%c0_9, %c0_10], %15 {strides = array<i32>} : memref<1x128xf32, #tpu.memory_space<vmem>>, vector<1x128xf32>,
    return
  }
  func.func @transform_0(%arg0: i32) -> (i32, i32) {
    %c0_i32 = arith.constant 0 : i32
    %c0_i32_0 = arith.constant 0 : i32
    return %arg0, %c0_i32 : i32, i32
  }
  func.func @transform_1(%arg0: i32) -> (i32, i32) {
    %c0_i32 = arith.constant 0 : i32
    %c0_i32_0 = arith.constant 0 : i32
    %c0_i32_1 = arith.constant 0 : i32
    return %c0_i32, %c0_i32_0 : i32, i32
  }
  func.func @transform_2(%arg0: i32) -> (i32, i32) {
    %c0_i32 = arith.constant 0 : i32
    %c0_i32_0 = arith.constant 0 : i32
    %c0_i32_1 = arith.constant 0 : i32
    return %c0_i32, %c0_i32_0 : i32, i32
  }
  func.func @transform_3(%arg0: i32) -> (i32, i32) {
    %c0_i32 = arith.constant 0 : i32
    %c0_i32_0 = arith.constant 0 : i32
    %c0_i32_1 = arith.constant 0 : i32
    return %c0_i32, %c0_i32_0 : i32, i32
  }
  func.func @transform_4(%arg0: i32) -> (i32, i32) {
    %c0_i32 = arith.constant 0 : i32
    %c0_i32_0 = arith.constant 0 : i32
    return %arg0, %c0_i32 : i32, i32
  }
}

</mosaic_0001>

<llo_original>
// kernel: tpu_custom_call.1
$region0: #{tpu_custom_call.1}
  #allocation0 [shape = 'u32[]', space=smem, size = 0x4, offset = 0x4, fixed_abs, tag = 'smem constant byte address 0x4 - core index']
  #allocation1 [shape = 'u32[144,128]{1,0:T(1,128)}', space=vmem, size = 0x12000, scoped, tag = 'internal scratch']
  #allocation2 [shape = 'f32[1,1]{1,0:T(1,128)S(6)}', space=smem, size = 0x200, scoped, tag = 'scoped memory for tpu_custom_call.1']
  %s0 = inlined_call_operand.vmem [shape: f32[128,8], index: 0, kind: input, shape index: {}]
  %s1 = inlined_call_operand.vmem [shape: f32[8,256], index: 1, kind: input, shape index: {}]
  %s2 = inlined_call_operand.vmem [shape: f32[1,256], index: 2, kind: input, shape index: {}]
  %s3 = inlined_call_operand.<no memory space> [shape: f32[1,1], index: 3, kind: input, shape index: {}]
  %s4 = inlined_call_operand.hbm [shape: f32[1,128], index: 4, kind: output, shape index: {}]
  %s5 = sld [smem:[#allocation0]]
  $region26: #{tpu_custom_call.1} parent=0
    _
  %s7 = ssub.s32 1, %s5
  %s8 = scalar_select 0, %s7, %s5
  %9 = sst [smem:[#allocation2]] %s3
  $region1: #{tpu_custom_call.1} parent=0
    #allocation3 [shape = 'u8[512]{0}', space=vmem, size = 0x400, scoped, tag = 'output window, operand 0, single buffered']
    #allocation4 [shape = 's32[1]{0}', space=sflag, size = 0x4, scoped, tag = 'scoped memory for tpu_custom_call.1']
    %10 = vsyncpa [#allocation4], 0
    // Predicated region
    $region2: #{tpu_custom_call.1} parent=1 // pred_check
      _
    $region3: #{tpu_custom_call.1} parent=1 // pred_check_branch
      %12 = sbr.rel (0) target = $region5
    $region4: #{tpu_custom_call.1} parent=1 // pred_region
      _
    $region5: #{tpu_custom_call.1} parent=1 // pred_fallthru
      _
    // Predicated region
    $region6: #{tpu_custom_call.1} parent=1 // pred_check
      _
    $region7: #{tpu_custom_call.1} parent=1 // pred_check_branch
      %14 = sbr.rel (0) target = $region9
    $region8: #{tpu_custom_call.1} parent=1 // pred_region
      _
    $region9: #{tpu_custom_call.1} parent=1 // pred_fallthru
      _
    // Predicated region
    $region10: #{tpu_custom_call.1} parent=1 // pred_check
      _
    $region11: #{tpu_custom_call.1} parent=1 // pred_check_branch
      %16 = sbr.rel (0) target = $region13
    $region12: #{tpu_custom_call.1} parent=1 // pred_region
      _
    $region13: #{tpu_custom_call.1} parent=1 // pred_fallthru
      _
    // Predicated region
    $region14: #{tpu_custom_call.1} parent=1 // pred_check
      _
    $region15: #{tpu_custom_call.1} parent=1 // pred_check_branch
      %18 = sbr.rel (0) target = $region17
    $region16: #{tpu_custom_call.1} parent=1 // pred_region
      _
    $region17: #{tpu_custom_call.1} parent=1 // pred_fallthru
      _
    %v19 = vld [vmem:[%s0] sm:$0xff]
    %v20 = vld [vmem:[%s0 + $0x8] sm:$0xff]
    %v21 = vld [vmem:[%s0 + $0x10] sm:$0xff]
    %v22 = vld [vmem:[%s0 + $0x18] sm:$0xff]
    %v23 = vld [vmem:[%s0 + $0x20] sm:$0xff]
    %v24 = vld [vmem:[%s0 + $0x28] sm:$0xff]
    %v25 = vld [vmem:[%s0 + $0x30] sm:$0xff]
    %v26 = vld [vmem:[%s0 + $0x38] sm:$0xff]
    %v27 = vld [vmem:[%s0 + $0x40] sm:$0xff]
    %v28 = vld [vmem:[%s0 + $0x48] sm:$0xff]
    %v29 = vld [vmem:[%s0 + $0x50] sm:$0xff]
    %v30 = vld [vmem:[%s0 + $0x58] sm:$0xff]
    %v31 = vld [vmem:[%s0 + $0x60] sm:$0xff]
    %v32 = vld [vmem:[%s0 + $0x68] sm:$0xff]
    %v33 = vld [vmem:[%s0 + $0x70] sm:$0xff]
    %v34 = vld [vmem:[%s0 + $0x78] sm:$0xff]
    %v35 = vld [vmem:[%s1] sm:$0xff]
    %v36 = vld [vmem:[%s1 + $0x8] sm:$0xff]
    %vm37 = vcmask 64512
    %v39 = vsel %vm37, %v19, 0
    %v42 = vsel %vm37, %v20, 0
    %v45 = vsel %vm37, %v21, 0
    %v48 = vsel %vm37, %v22, 0
    %v51 = vsel %vm37, %v23, 0
    %v54 = vsel %vm37, %v24, 0
    %v57 = vsel %vm37, %v25, 0
    %v60 = vsel %vm37, %v26, 0
    %v63 = vsel %vm37, %v27, 0
    %v66 = vsel %vm37, %v28, 0
    %v69 = vsel %vm37, %v29, 0
    %v72 = vsel %vm37, %v30, 0
    %v75 = vsel %vm37, %v31, 0
    %v78 = vsel %vm37, %v32, 0
    %v81 = vsel %vm37, %v33, 0
    %v84 = vsel %vm37, %v34, 0
    %86 = vmatprep.subr.mxu0 0.0
    %87 = vmatpush1.msra.mxu0 0.0
    %88 = vmatprep.subr.mxu0 0.0
    %89 = vmatpush1.msra.mxu0 0.0
    %90 = vmatprep.subr.mxu0 0.0
    %91 = vmatpush1.msra.mxu0 0.0
    %92 = vmatprep.subr.mxu0 0.0
    %93 = vmatpush1.msra.mxu0 0.0
    %94 = vmatprep.subr.mxu0 0.0
    %95 = vmatpush1.msra.mxu0 0.0
    %96 = vmatprep.subr.mxu0 0.0
    %97 = vmatpush1.msra.mxu0 0.0
    %98 = vmatprep.subr.mxu0 0.0
    %99 = vmatpush1.msra.mxu0 0.0
    %100 = vmatprep.subr.mxu0 0.0
    %101 = vmatpush1.msra.mxu0 0.0
    %102 = vmatprep.subr.mxu0 0.0
    %103 = vmatpush1.msra.mxu0 0.0
    %104 = vmatprep.subr.mxu0 0.0
    %105 = vmatpush1.msra.mxu0 0.0
    %106 = vmatprep.subr.mxu0 0.0
    %107 = vmatpush1.msra.mxu0 0.0
    %108 = vmatprep.subr.mxu0 0.0
    %109 = vmatpush1.msra.mxu0 0.0
    %110 = vmatprep.subr.mxu0 0.0
    %111 = vmatpush1.msra.mxu0 0.0
    %112 = vmatprep.subr.mxu0 0.0
    %113 = vmatpush1.msra.mxu0 0.0
    %114 = vmatprep.subr.mxu0 0.0
    %115 = vmatpush1.msra.mxu0 0.0
    %116 = vmatprep.subr.mxu0 %v36
    %117 = vmatpush1.msra.mxu0 %v35
    %118 = vmatprep.subr.mxu0 0.0
    %119 = vmatpush2.msra.mxu0 0.0
    %120 = vmatprep.subr.mxu0 0.0
    %121 = vmatpush2.msra.mxu0 0.0
    %122 = vmatprep.subr.mxu0 0.0
    %123 = vmatpush2.msra.mxu0 0.0
    %124 = vmatprep.subr.mxu0 0.0
    %125 = vmatpush2.msra.mxu0 0.0
    %126 = vmatprep.subr.mxu0 0.0
    %127 = vmatpush2.msra.mxu0 0.0
    %128 = vmatprep.subr.mxu0 0.0
    %129 = vmatpush2.msra.mxu0 0.0
    %130 = vmatprep.subr.mxu0 0.0
    %131 = vmatpush2.msra.mxu0 0.0
    %132 = vmatprep.subr.mxu0 0.0
    %133 = vmatpush2.msra.mxu0 0.0
    %134 = vmatprep.subr.mxu0 0.0
    %135 = vmatpush2.msra.mxu0 0.0
    %136 = vmatprep.subr.mxu0 0.0
    %137 = vmatpush2.msra.mxu0 0.0
    %138 = vmatprep.subr.mxu0 0.0
    %139 = vmatpush2.msra.mxu0 0.0
    %140 = vmatprep.subr.mxu0 0.0
    %141 = vmatpush2.msra.mxu0 0.0
    %142 = vmatprep.subr.mxu0 0.0
    %143 = vmatpush2.msra.mxu0 0.0
    %144 = vmatprep.subr.mxu0 0.0
    %145 = vmatpush2.msra.mxu0 0.0
    %146 = vmatprep.subr.mxu0 0.0
    %147 = vmatpush2.msra.mxu0 0.0
    %148 = vmatprep.subr.mxu0 0.0
    %149 = vmatpush2.msra.mxu0 0.0
    %150 = vmatprep.mubr.f32.mxu0 0.0
    %151 = vmatmul.mubr.f32.gmra.mxu0 %v39
    %v152 = vpop.f32.mrf.mxu0
    %v153 = vadd.f32 0.0, %v152
    %v154 = vpop.f32.mrf.mxu0
    %v155 = vadd.f32 0.0, %v154
    %156 = vmatprep.mubr.f32.mxu0 0.0
    %157 = vmatmul.mubr.f32.gmra.mxu0 %v42
    %v158 = vpop.f32.mrf.mxu0
    %v159 = vadd.f32 0.0, %v158
    %v160 = vpop.f32.mrf.mxu0
    %v161 = vadd.f32 0.0, %v160
    %162 = vmatprep.mubr.f32.mxu0 0.0
    %163 = vmatmul.mubr.f32.gmra.mxu0 %v45
    %v164 = vpop.f32.mrf.mxu0
    %v165 = vadd.f32 0.0, %v164
    %v166 = vpop.f32.mrf.mxu0
    %v167 = vadd.f32 0.0, %v166
    %168 = vmatprep.mubr.f32.mxu0 0.0
    %169 = vmatmul.mubr.f32.gmra.mxu0 %v48
    %v170 = vpop.f32.mrf.mxu0
    %v171 = vadd.f32 0.0, %v170
    %v172 = vpop.f32.mrf.mxu0
    %v173 = vadd.f32 0.0, %v172
    %174 = vmatprep.mubr.f32.mxu0 0.0
    %175 = vmatmul.mubr.f32.gmra.mxu0 %v51
    %v176 = vpop.f32.mrf.mxu0
    %v177 = vadd.f32 0.0, %v176
    %v178 = vpop.f32.mrf.mxu0
    %v179 = vadd.f32 0.0, %v178
    %180 = vmatprep.mubr.f32.mxu0 0.0
    %181 = vmatmul.mubr.f32.gmra.mxu0 %v54
    %v182 = vpop.f32.mrf.mxu0
    %v183 = vadd.f32 0.0, %v182
    %v184 = vpop.f32.mrf.mxu0
    %v185 = vadd.f32 0.0, %v184
    %186 = vmatprep.mubr.f32.mxu0 0.0
    %187 = vmatmul.mubr.f32.gmra.mxu0 %v57
    %v188 = vpop.f32.mrf.mxu0
    %v189 = vadd.f32 0.0, %v188
    %v190 = vpop.f32.mrf.mxu0
    %v191 = vadd.f32 0.0, %v190
    %192 = vmatprep.mubr.f32.mxu0 0.0
    %193 = vmatmul.mubr.f32.gmra.mxu0 %v60
    %v194 = vpop.f32.mrf.mxu0
    %v195 = vadd.f32 0.0, %v194
    %v196 = vpop.f32.mrf.mxu0
    %v197 = vadd.f32 0.0, %v196
    %198 = vmatprep.mubr.f32.mxu0 0.0
    %199 = vmatmul.mubr.f32.gmra.mxu0 %v63
    %v200 = vpop.f32.mrf.mxu0
    %v201 = vadd.f32 0.0, %v200
    %v202 = vpop.f32.mrf.mxu0
    %v203 = vadd.f32 0.0, %v202
    %204 = vmatprep.mubr.f32.mxu0 0.0
    %205 = vmatmul.mubr.f32.gmra.mxu0 %v66
    %v206 = vpop.f32.mrf.mxu0
    %v207 = vadd.f32 0.0, %v206
    %v208 = vpop.f32.mrf.mxu0
    %v209 = vadd.f32 0.0, %v208
    %210 = vmatprep.mubr.f32.mxu0 0.0
    %211 = vmatmul.mubr.f32.gmra.mxu0 %v69
    %v212 = vpop.f32.mrf.mxu0
    %v213 = vadd.f32 0.0, %v212
    %v214 = vpop.f32.mrf.mxu0
    %v215 = vadd.f32 0.0, %v214
    %216 = vmatprep.mubr.f32.mxu0 0.0
    %217 = vmatmul.mubr.f32.gmra.mxu0 %v72
    %v218 = vpop.f32.mrf.mxu0
    %v219 = vadd.f32 0.0, %v218
    %v220 = vpop.f32.mrf.mxu0
    %v221 = vadd.f32 0.0, %v220
    %222 = vmatprep.mubr.f32.mxu0 0.0
    %223 = vmatmul.mubr.f32.gmra.mxu0 %v75
    %v224 = vpop.f32.mrf.mxu0
    %v225 = vadd.f32 0.0, %v224
    %v226 = vpop.f32.mrf.mxu0
    %v227 = vadd.f32 0.0, %v226
    %228 = vmatprep.mubr.f32.mxu0 0.0
    %229 = vmatmul.mubr.f32.gmra.mxu0 %v78
    %v230 = vpop.f32.mrf.mxu0
    %v231 = vadd.f32 0.0, %v230
    %v232 = vpop.f32.mrf.mxu0
    %v233 = vadd.f32 0.0, %v232
    %234 = vmatprep.mubr.f32.mxu0 0.0
    %235 = vmatmul.mubr.f32.gmra.mxu0 %v81
    %v236 = vpop.f32.mrf.mxu0
    %v237 = vadd.f32 0.0, %v236
    %v238 = vpop.f32.mrf.mxu0
    %v239 = vadd.f32 0.0, %v238
    %240 = vmatprep.mubr.f32.mxu0 0.0
    %241 = vmatmul.mubr.f32.gmra.mxu0 %v84
    %v242 = vpop.f32.mrf.mxu0
    %v243 = vadd.f32 0.0, %v242
    %v244 = vpop.f32.mrf.mxu0
    %v245 = vadd.f32 0.0, %v244
    %246 = vdwg.mxu0
    %v247 = vxor.u32 %v153, 2147483648
    %v248 = vxor.u32 %v155, 2147483648
    %v249 = vxor.u32 %v159, 2147483648
    %v250 = vxor.u32 %v161, 2147483648
    %v251 = vxor.u32 %v165, 2147483648
    %v252 = vxor.u32 %v167, 2147483648
    %v253 = vxor.u32 %v171, 2147483648
    %v254 = vxor.u32 %v173, 2147483648
    %v255 = vxor.u32 %v177, 2147483648
    %v256 = vxor.u32 %v179, 2147483648
    %v257 = vxor.u32 %v183, 2147483648
    %v258 = vxor.u32 %v185, 2147483648
    %v259 = vxor.u32 %v189, 2147483648
    %v260 = vxor.u32 %v191, 2147483648
    %v261 = vxor.u32 %v195, 2147483648
    %v262 = vxor.u32 %v197, 2147483648
    %v263 = vxor.u32 %v201, 2147483648
    %v264 = vxor.u32 %v203, 2147483648
    %v265 = vxor.u32 %v207, 2147483648
    %v266 = vxor.u32 %v209, 2147483648
    %v267 = vxor.u32 %v213, 2147483648
    %v268 = vxor.u32 %v215, 2147483648
    %v269 = vxor.u32 %v219, 2147483648
    %v270 = vxor.u32 %v221, 2147483648
    %v271 = vxor.u32 %v225, 2147483648
    %v272 = vxor.u32 %v227, 2147483648
    %v273 = vxor.u32 %v231, 2147483648
    %v274 = vxor.u32 %v233, 2147483648
    %v275 = vxor.u32 %v237, 2147483648
    %v276 = vxor.u32 %v239, 2147483648
    %v277 = vxor.u32 %v243, 2147483648
    %v278 = vxor.u32 %v245, 2147483648
    %v279 = vmul.f32 %v247, 1.442695
    %v280 = vpow.pop %v279
    %v281 = vmul.f32 %v248, 1.442695
    %v282 = vpow.pop %v281
    %v283 = vmul.f32 %v249, 1.442695
    %v284 = vpow.pop %v283
    %v285 = vmul.f32 %v250, 1.442695
    %v286 = vpow.pop %v285
    %v287 = vmul.f32 %v251, 1.442695
    %v288 = vpow.pop %v287
    %v289 = vmul.f32 %v252, 1.442695
    %v290 = vpow.pop %v289
    %v291 = vmul.f32 %v253, 1.442695
    %v292 = vpow.pop %v291
    %v293 = vmul.f32 %v254, 1.442695
    %v294 = vpow.pop %v293
    %v295 = vmul.f32 %v255, 1.442695
    %v296 = vpow.pop %v295
    %v297 = vmul.f32 %v256, 1.442695
    %v298 = vpow.pop %v297
    %v299 = vmul.f32 %v257, 1.442695
    %v300 = vpow.pop %v299
    %v301 = vmul.f32 %v258, 1.442695
    %v302 = vpow.pop %v301
    %v303 = vmul.f32 %v259, 1.442695
    %v304 = vpow.pop %v303
    %v305 = vmul.f32 %v260, 1.442695
    %v306 = vpow.pop %v305
    %v307 = vmul.f32 %v261, 1.442695
    %v308 = vpow.pop %v307
    %v309 = vmul.f32 %v262, 1.442695
    %v310 = vpow.pop %v309
    %v311 = vmul.f32 %v263, 1.442695
    %v312 = vpow.pop %v311
    %v313 = vmul.f32 %v264, 1.442695
    %v314 = vpow.pop %v313
    %v315 = vmul.f32 %v265, 1.442695
    %v316 = vpow.pop %v315
    %v317 = vmul.f32 %v266, 1.442695
    %v318 = vpow.pop %v317
    %v319 = vmul.f32 %v267, 1.442695
    %v320 = vpow.pop %v319
    %v321 = vmul.f32 %v268, 1.442695
    %v322 = vpow.pop %v321
    %v323 = vmul.f32 %v269, 1.442695
    %v324 = vpow.pop %v323
    %v325 = vmul.f32 %v270, 1.442695
    %v326 = vpow.pop %v325
    %v327 = vmul.f32 %v271, 1.442695
    %v328 = vpow.pop %v327
    %v329 = vmul.f32 %v272, 1.442695
    %v330 = vpow.pop %v329
    %v331 = vmul.f32 %v273, 1.442695
    %v332 = vpow.pop %v331
    %v333 = vmul.f32 %v274, 1.442695
    %v334 = vpow.pop %v333
    %v335 = vmul.f32 %v275, 1.442695
    %v336 = vpow.pop %v335
    %v337 = vmul.f32 %v276, 1.442695
    %v338 = vpow.pop %v337
    %v339 = vmul.f32 %v277, 1.442695
    %v340 = vpow.pop %v339
    %v341 = vmul.f32 %v278, 1.442695
    %v342 = vpow.pop %v341
    %v343 = vadd.f32 %v280, 1.0
    %v344 = vadd.f32 %v282, 1.0
    %v345 = vadd.f32 %v284, 1.0
    %v346 = vadd.f32 %v286, 1.0
    %v347 = vadd.f32 %v288, 1.0
    %v348 = vadd.f32 %v290, 1.0
    %v349 = vadd.f32 %v292, 1.0
    %v350 = vadd.f32 %v294, 1.0
    %v351 = vadd.f32 %v296, 1.0
    %v352 = vadd.f32 %v298, 1.0
    %v353 = vadd.f32 %v300, 1.0
    %v354 = vadd.f32 %v302, 1.0
    %v355 = vadd.f32 %v304, 1.0
    %v356 = vadd.f32 %v306, 1.0
    %v357 = vadd.f32 %v308, 1.0
    %v358 = vadd.f32 %v310, 1.0
    %v359 = vadd.f32 %v312, 1.0
    %v360 = vadd.f32 %v314, 1.0
    %v361 = vadd.f32 %v316, 1.0
    %v362 = vadd.f32 %v318, 1.0
    %v363 = vadd.f32 %v320, 1.0
    %v364 = vadd.f32 %v322, 1.0
    %v365 = vadd.f32 %v324, 1.0
    %v366 = vadd.f32 %v326, 1.0
    %v367 = vadd.f32 %v328, 1.0
    %v368 = vadd.f32 %v330, 1.0
    %v369 = vadd.f32 %v332, 1.0
    %v370 = vadd.f32 %v334, 1.0
    %v371 = vadd.f32 %v336, 1.0
    %v372 = vadd.f32 %v338, 1.0
    %v373 = vadd.f32 %v340, 1.0
    %v374 = vadd.f32 %v342, 1.0
    %v375 = vrcp.pop %v343
    %v376 = vmul.f32 1.0, %v375
    %v377 = vrcp.pop %v344
    %v378 = vmul.f32 1.0, %v377
    %v379 = vrcp.pop %v345
    %v380 = vmul.f32 1.0, %v379
    %v381 = vrcp.pop %v346
    %v382 = vmul.f32 1.0, %v381
    %v383 = vrcp.pop %v347
    %v384 = vmul.f32 1.0, %v383
    %v385 = vrcp.pop %v348
    %v386 = vmul.f32 1.0, %v385
    %v387 = vrcp.pop %v349
    %v388 = vmul.f32 1.0, %v387
    %v389 = vrcp.pop %v350
    %v390 = vmul.f32 1.0, %v389
    %v391 = vrcp.pop %v351
    %v392 = vmul.f32 1.0, %v391
    %v393 = vrcp.pop %v352
    %v394 = vmul.f32 1.0, %v393
    %v395 = vrcp.pop %v353
    %v396 = vmul.f32 1.0, %v395
    %v397 = vrcp.pop %v354
    %v398 = vmul.f32 1.0, %v397
    %v399 = vrcp.pop %v355
    %v400 = vmul.f32 1.0, %v399
    %v401 = vrcp.pop %v356
    %v402 = vmul.f32 1.0, %v401
    %v403 = vrcp.pop %v357
    %v404 = vmul.f32 1.0, %v403
    %v405 = vrcp.pop %v358
    %v406 = vmul.f32 1.0, %v405
    %v407 = vrcp.pop %v359
    %v408 = vmul.f32 1.0, %v407
    %v409 = vrcp.pop %v360
    %v410 = vmul.f32 1.0, %v409
    %v411 = vrcp.pop %v361
    %v412 = vmul.f32 1.0, %v411
    %v413 = vrcp.pop %v362
    %v414 = vmul.f32 1.0, %v413
    %v415 = vrcp.pop %v363
    %v416 = vmul.f32 1.0, %v415
    %v417 = vrcp.pop %v364
    %v418 = vmul.f32 1.0, %v417
    %v419 = vrcp.pop %v365
    %v420 = vmul.f32 1.0, %v419
    %v421 = vrcp.pop %v366
    %v422 = vmul.f32 1.0, %v421
    %v423 = vrcp.pop %v367
    %v424 = vmul.f32 1.0, %v423
    %v425 = vrcp.pop %v368
    %v426 = vmul.f32 1.0, %v425
    %v427 = vrcp.pop %v369
    %v428 = vmul.f32 1.0, %v427
    %v429 = vrcp.pop %v370
    %v430 = vmul.f32 1.0, %v429
    %v431 = vrcp.pop %v371
    %v432 = vmul.f32 1.0, %v431
    %v433 = vrcp.pop %v372
    %v434 = vmul.f32 1.0, %v433
    %v435 = vrcp.pop %v373
    %v436 = vmul.f32 1.0, %v435
    %v437 = vrcp.pop %v374
    %v438 = vmul.f32 1.0, %v437
    %v439 = vld [vmem:[%s2] sm:$0x3]
    %v441 = vlaneseq
    %v442 = vshrl.u32 %v441, 7
    %v443 = vsub.s32 0, %v442
    %v444 = vrot.slane %v439, %v443
    %v445 = vlaneseq
    %v446 = vshrl.u32 %v445, 7
    %v447 = vsub.s32 1, %v446
    %v448 = vrot.slane %v439, %v447
    %v451 = vmul.f32 %v376, %v444
    %v452 = vmul.f32 %v378, %v448
    %v453 = vmul.f32 %v380, %v444
    %v454 = vmul.f32 %v382, %v448
    %v455 = vmul.f32 %v384, %v444
    %v456 = vmul.f32 %v386, %v448
    %v457 = vmul.f32 %v388, %v444
    %v458 = vmul.f32 %v390, %v448
    %v459 = vmul.f32 %v392, %v444
    %v460 = vmul.f32 %v394, %v448
    %v461 = vmul.f32 %v396, %v444
    %v462 = vmul.f32 %v398, %v448
    %v463 = vmul.f32 %v400, %v444
    %v464 = vmul.f32 %v402, %v448
    %v465 = vmul.f32 %v404, %v444
    %v466 = vmul.f32 %v406, %v448
    %v467 = vmul.f32 %v408, %v444
    %v468 = vmul.f32 %v410, %v448
    %v469 = vmul.f32 %v412, %v444
    %v470 = vmul.f32 %v414, %v448
    %v471 = vmul.f32 %v416, %v444
    %v472 = vmul.f32 %v418, %v448
    %v473 = vmul.f32 %v420, %v444
    %v474 = vmul.f32 %v422, %v448
    %v475 = vmul.f32 %v424, %v444
    %v476 = vmul.f32 %v426, %v448
    %v477 = vmul.f32 %v428, %v444
    %v478 = vmul.f32 %v430, %v448
    %v479 = vmul.f32 %v432, %v444
    %v480 = vmul.f32 %v434, %v448
    %v481 = vmul.f32 %v436, %v444
    %v482 = vmul.f32 %v438, %v448
    %v483 = vadd.f32 %v451, %v452
    %484 = vadd.xlane.f32.xlu0 %v483
    %v485 = vpop.xlane.xlu0 %484
    %v486 = vadd.f32 %v453, %v454
    %487 = vadd.xlane.f32.xlu0 %v486
    %v488 = vpop.xlane.xlu0 %487
    %v489 = vadd.f32 %v455, %v456
    %490 = vadd.xlane.f32.xlu0 %v489
    %v491 = vpop.xlane.xlu0 %490
    %v492 = vadd.f32 %v457, %v458
    %493 = vadd.xlane.f32.xlu0 %v492
    %v494 = vpop.xlane.xlu0 %493
    %v495 = vadd.f32 %v459, %v460
    %496 = vadd.xlane.f32.xlu0 %v495
    %v497 = vpop.xlane.xlu0 %496
    %v498 = vadd.f32 %v461, %v462
    %499 = vadd.xlane.f32.xlu0 %v498
    %v500 = vpop.xlane.xlu0 %499
    %v501 = vadd.f32 %v463, %v464
    %502 = vadd.xlane.f32.xlu0 %v501
    %v503 = vpop.xlane.xlu0 %502
    %v504 = vadd.f32 %v465, %v466
    %505 = vadd.xlane.f32.xlu0 %v504
    %v506 = vpop.xlane.xlu0 %505
    %v507 = vadd.f32 %v467, %v468
    %508 = vadd.xlane.f32.xlu0 %v507
    %v509 = vpop.xlane.xlu0 %508
    %v510 = vadd.f32 %v469, %v470
    %511 = vadd.xlane.f32.xlu0 %v510
    %v512 = vpop.xlane.xlu0 %511
    %v513 = vadd.f32 %v471, %v472
    %514 = vadd.xlane.f32.xlu0 %v513
    %v515 = vpop.xlane.xlu0 %514
    %v516 = vadd.f32 %v473, %v474
    %517 = vadd.xlane.f32.xlu0 %v516
    %v518 = vpop.xlane.xlu0 %517
    %v519 = vadd.f32 %v475, %v476
    %520 = vadd.xlane.f32.xlu0 %v519
    %v521 = vpop.xlane.xlu0 %520
    %v522 = vadd.f32 %v477, %v478
    %523 = vadd.xlane.f32.xlu0 %v522
    %v524 = vpop.xlane.xlu0 %523
    %v525 = vadd.f32 %v479, %v480
    %526 = vadd.xlane.f32.xlu0 %v525
    %v527 = vpop.xlane.xlu0 %526
    %v528 = vadd.f32 %v481, %v482
    %529 = vadd.xlane.f32.xlu0 %v528
    %v530 = vpop.xlane.xlu0 %529
    %s531 = sld [smem:[#allocation2]]
    %v532 = vstv %s531
    %v533 = vadd.f32 %v485, %v532
    %v534 = vadd.f32 %v488, %v532
    %v535 = vadd.f32 %v491, %v532
    %v536 = vadd.f32 %v494, %v532
    %v537 = vadd.f32 %v497, %v532
    %v538 = vadd.f32 %v500, %v532
    %v539 = vadd.f32 %v503, %v532
    %v540 = vadd.f32 %v506, %v532
    %v541 = vadd.f32 %v509, %v532
    %v542 = vadd.f32 %v512, %v532
    %v543 = vadd.f32 %v515, %v532
    %v544 = vadd.f32 %v518, %v532
    %v545 = vadd.f32 %v521, %v532
    %v546 = vadd.f32 %v524, %v532
    %v547 = vadd.f32 %v527, %v532
    %v548 = vadd.f32 %v530, %v532
    %v565 = vlaneseq
    %v566 = vand.u32 %v565, 127
    %v567 = vlaneseq
    %v568 = vshrl.u32 %v567, 7
    %v569 = vsub.s32 %v566, %v568
    %v570 = vrot.slane %v533, %v569
    %v571 = vadd.s32 %v566, 4294967288
    %v572 = vlaneseq
    %v573 = vshrl.u32 %v572, 7
    %v574 = vsub.s32 %v571, %v573
    %v575 = vrot.slane %v534, %v574
    %vm576 = vcmask 130112
    %v577 = vsel %vm576, %v575, %v570
    %v578 = vadd.s32 %v566, 4294967280
    %v579 = vlaneseq
    %v580 = vshrl.u32 %v579, 7
    %v581 = vsub.s32 %v578, %v580
    %v582 = vrot.slane %v535, %v581
    %vm583 = vcmask 195712
    %v584 = vsel %vm583, %v582, %v577
    %v585 = vadd.s32 %v566, 4294967272
    %v586 = vlaneseq
    %v587 = vshrl.u32 %v586, 7
    %v588 = vsub.s32 %v585, %v587
    %v589 = vrot.slane %v536, %v588
    %vm590 = vcmask 261312
    %v591 = vsel %vm590, %v589, %v584
    %v592 = vadd.s32 %v566, 4294967264
    %v593 = vlaneseq
    %v594 = vshrl.u32 %v593, 7
    %v595 = vsub.s32 %v592, %v594
    %v596 = vrot.slane %v537, %v595
    %vm597 = vcmask 326912
    %v598 = vsel %vm597, %v596, %v591
    %v599 = vadd.s32 %v566, 4294967256
    %v600 = vlaneseq
    %v601 = vshrl.u32 %v600, 7
    %v602 = vsub.s32 %v599, %v601
    %v603 = vrot.slane %v538, %v602
    %vm604 = vcmask 392512
    %v605 = vsel %vm604, %v603, %v598
    %v606 = vadd.s32 %v566, 4294967248
    %v607 = vlaneseq
    %v608 = vshrl.u32 %v607, 7
    %v609 = vsub.s32 %v606, %v608
    %v610 = vrot.slane %v539, %v609
    %vm611 = vcmask 458112
    %v612 = vsel %vm611, %v610, %v605
    %v613 = vadd.s32 %v566, 4294967240
    %v614 = vlaneseq
    %v615 = vshrl.u32 %v614, 7
    %v616 = vsub.s32 %v613, %v615
    %v617 = vrot.slane %v540, %v616
    %vm618 = vcmask 523712
    %v619 = vsel %vm618, %v617, %v612
    %v620 = vadd.s32 %v566, 4294967232
    %v621 = vlaneseq
    %v622 = vshrl.u32 %v621, 7
    %v623 = vsub.s32 %v620, %v622
    %v624 = vrot.slane %v541, %v623
    %vm625 = vcmask 589312
    %v626 = vsel %vm625, %v624, %v619
    %v627 = vadd.s32 %v566, 4294967224
    %v628 = vlaneseq
    %v629 = vshrl.u32 %v628, 7
    %v630 = vsub.s32 %v627, %v629
    %v631 = vrot.slane %v542, %v630
    %vm632 = vcmask 654912
    %v633 = vsel %vm632, %v631, %v626
    %v634 = vadd.s32 %v566, 4294967216
    %v635 = vlaneseq
    %v636 = vshrl.u32 %v635, 7
    %v637 = vsub.s32 %v634, %v636
    %v638 = vrot.slane %v543, %v637
    %vm639 = vcmask 720512
    %v640 = vsel %vm639, %v638, %v633
    %v641 = vadd.s32 %v566, 4294967208
    %v642 = vlaneseq
    %v643 = vshrl.u32 %v642, 7
    %v644 = vsub.s32 %v641, %v643
    %v645 = vrot.slane %v544, %v644
    %vm646 = vcmask 786112
    %v647 = vsel %vm646, %v645, %v640
    %v648 = vadd.s32 %v566, 4294967200
    %v649 = vlaneseq
    %v650 = vshrl.u32 %v649, 7
    %v651 = vsub.s32 %v648, %v650
    %v652 = vrot.slane %v545, %v651
    %vm653 = vcmask 851712
    %v654 = vsel %vm653, %v652, %v647
    %v655 = vadd.s32 %v566, 4294967192
    %v656 = vlaneseq
    %v657 = vshrl.u32 %v656, 7
    %v658 = vsub.s32 %v655, %v657
    %v659 = vrot.slane %v546, %v658
    %vm660 = vcmask 917312
    %v661 = vsel %vm660, %v659, %v654
    %v662 = vadd.s32 %v566, 4294967184
    %v663 = vlaneseq
    %v664 = vshrl.u32 %v663, 7
    %v665 = vsub.s32 %v662, %v664
    %v666 = vrot.slane %v547, %v665
    %vm667 = vcmask 982912
    %v668 = vsel %vm667, %v666, %v661
    %v669 = vadd.s32 %v566, 4294967176
    %v670 = vlaneseq
    %v671 = vshrl.u32 %v670, 7
    %v672 = vsub.s32 %v669, %v671
    %v673 = vrot.slane %v548, %v672
    %vm674 = vcmask 1048512
    %v675 = vsel %vm674, %v673, %v668
    %677 = vst [vmem:[#allocation3] sm:$0x1] %v675
    // Predicated region
    $region18: #{tpu_custom_call.1} parent=1 // pred_check
      _
    $region19: #{tpu_custom_call.1} parent=1 // pred_check_branch
      %679 = sbr.rel (0) target = $region21
    $region20: #{tpu_custom_call.1} parent=1 // pred_region
      %s681 = ssub.s32 16, 16
      %682 = vsyncadd [#allocation4], %s681
      %s684 = sshll.u32 [#allocation3], 4
      %s685 = int_to_ptr.vmem [resolvable:$true] %s684
      %687 = dma.vmem_to_hbm [thread:$0]  %s685, 16, %s4, [#allocation4]
    $region21: #{tpu_custom_call.1} parent=1 // pred_fallthru
      _
    // Predicated region
    $region22: #{tpu_custom_call.1} parent=1 // pred_check
      _
    $region23: #{tpu_custom_call.1} parent=1 // pred_check_branch
      %689 = sbr.rel (0) target = $region25
    $region24: #{tpu_custom_call.1} parent=1 // pred_region
      %690 = dma.done [#allocation4], 16
    $region25: #{tpu_custom_call.1} parent=1 // pred_fallthru
      _
    %691 = vsyncpa [#allocation4], 1

</llo_original>
